<compile_context>
chip_gen: v5e
topology: v5e:2x2
jax: 0.10.0
libtpu: 0.0.40
codegen_flags: <defaults>
</compile_context>

<pallas_src>
import functools

import jax
import jax.numpy as jnp
from jax.experimental import pallas as pl
from jax.experimental.pallas import tpu as pltpu


def _round_up(n: int, m: int) -> int:
    return ((n + m - 1) // m) * m


def _pad_to(a, shape):
    pads = [(0, t - s) for s, t in zip(a.shape, shape)]
    if all(p == (0, 0) for p in pads):
        return a
    return jnp.pad(a, pads)


def mlp_kernel(x_ref, w1_ref, b1_ref, w2_ref, b2_ref, o_ref, acc_ref):
    """One (batch-tile, hidden-tile) step of the fused two-layer MLP."""
    k = pl.program_id(1)

    @pl.when(k == 0)
    def _():
        acc_ref[...] = jnp.zeros_like(acc_ref)

    x = x_ref[...]
    # fc1 partial for this hidden tile: accumulate in f32, add bias in f32,
    # then cast back to the compute dtype for the second MXU pass.
    h = jnp.dot(x, w1_ref[...], preferred_element_type=jnp.float32) + b1_ref[...]
    h = h.astype(x.dtype)
    # fc2 partial contribution of this hidden tile into the resident accumulator.
    acc_ref[...] += jnp.dot(h, w2_ref[...], preferred_element_type=jnp.float32)

    @pl.when(k == pl.num_programs(1) - 1)
    def _():
        o_ref[...] = (acc_ref[...] + b2_ref[...]).astype(o_ref.dtype)


def _vmem_cap_bytes() -> int:
    """Physical VMEM per core (128 MiB v5e/v6e, 64 MiB v7x); safe fallback."""
    try:
        return int(pltpu.get_tpu_info().vmem_capacity_bytes)
    except Exception:
        return 64 << 20  # conservative (v7x per-TC size) — correct everywhere


def _vmem_estimate(TM, IN, TH, OUT, itemsize, out_itemsize):
    """Double-buffered x/W1/b1/W2/b2/out tiles + the f32 resident accumulator."""
    return (2 * TM * IN * itemsize          # x tile
            + 2 * IN * TH * itemsize        # W1 tile
            + 2 * TH * 4                    # b1 tile (f32)
            + 2 * TH * OUT * itemsize       # W2 tile
            + 2 * OUT * 4                   # b2 (f32)
            + 2 * TM * OUT * out_itemsize   # output tile
            + TM * OUT * 4)                 # f32 accumulator scratch


def prepare_mlp_params(w1, b1, w2, b2, compute_dtype=jnp.bfloat16):
    """Pad feature dims to multiples of 128 and cast weights once.

    Cache the returned padded params across forward calls (inference loops) so
    the full weight matrices are not re-read/re-written in HBM per call.
    Zero padding is exact: padded input columns hit zero W1 rows, padded hidden
    units get zero bias and zero W2 rows, padded output columns are sliced off.
    """
    in_size, hidden_size = w1.shape
    out_size = w2.shape[1]
    IN = _round_up(in_size, 128)
    HID = _round_up(hidden_size, 128)
    OUT = _round_up(out_size, 128)
    w1p = _pad_to(w1, (IN, HID)).astype(compute_dtype)
    b1p = _pad_to(b1.reshape(1, -1), (1, HID)).astype(jnp.float32)
    w2p = _pad_to(w2, (HID, OUT)).astype(compute_dtype)
    b2p = _pad_to(b2.reshape(1, -1), (1, OUT)).astype(jnp.float32)
    return (w1p, b1p, w2p, b2p), (in_size, hidden_size, out_size)


@functools.partial(jax.jit, static_argnames=("dims", "tm", "th"))
def mlp_forward_prepared(x, w1p, b1p, w2p, b2p, *, dims, tm=512, th=2048):
    in_size, _, out_size = dims
    B = x.shape[0]
    IN, HID = w1p.shape
    OUT = w2p.shape[1]
    out_dtype = x.dtype
    compute_dtype = w1p.dtype
    itemsize = jnp.dtype(compute_dtype).itemsize
    out_itemsize = jnp.dtype(out_dtype).itemsize

    # Sublane granularity: bf16 vregs pack (16, 128), f32 pack (8, 128).
    sub = 16 if itemsize == 2 else 8

    # ---- batch tile ----
    TM = _round_up(min(tm, B), sub)
    Bp = _round_up(B, TM)
    # v7x megacore: give the "parallel" batch axis >= 2 grid steps when possible.
    if Bp // TM < 2 and Bp >= 2 * sub:
        TM_half = _round_up((Bp + 1) // 2, sub)
        if TM_half < TM:
            TM = TM_half
            Bp = _round_up(B, TM)

    # ---- hidden (reduction) tile ----
    vmem_cap = _vmem_cap_bytes()
    budget = vmem_cap - (12 << 20)  # headroom for compiler scratch / semaphores

    divisors = [c for c in range(128, HID + 1, 128) if HID % c == 0]
    TH = None
    for cand in sorted(divisors, reverse=True):
        # Prefer full residency (TH == HID): weights DMA'd from HBM exactly once.
        if cand != HID and cand > th:
            continue
        if _vmem_estimate(TM, IN, cand, OUT, itemsize, out_itemsize) <= budget:
            TH = cand
            break
    if TH is None:
        TH = 128
        # Last resort: shrink the batch tile until the narrowest hidden tile fits.
        # TODO(synk): for multi-thousand-wide OUT on v7x, add an output-N grid
        # axis so the W2 tile and (TM, OUT) accumulator stop scaling with OUT.
        while TM > sub and _vmem_estimate(TM, IN, TH, OUT, itemsize, out_itemsize) > budget:
            TM = max(sub, _round_up(TM // 2, sub))
            Bp = _round_up(B, TM)

    xp = _pad_to(x, (Bp, IN)).astype(compute_dtype)

    grid = (Bp // TM, HID // TH)
    n_btiles, k_steps = grid

    # Weights re-stream once per batch tile only when the k axis doesn't collapse.
    weight_bytes = (w1p.size + w2p.size) * itemsize
    weight_passes = 1 if k_steps == 1 else n_btiles
    cost = pl.CostEstimate(
        flops=2 * Bp * (IN * HID + HID * OUT),
        bytes_accessed=int(xp.size * itemsize
                           + weight_passes * weight_bytes
                           + (b1p.size + b2p.size) * 4
                           + Bp * OUT * out_itemsize),
        transcendentals=0,
    )

    vmem_est = _vmem_estimate(TM, IN, TH, OUT, itemsize, out_itemsize)
    vmem_limit = int(min(max(vmem_est + (4 << 20), 32 << 20), vmem_cap - (8 << 20)))

    out_padded = pl.pallas_call(
        mlp_kernel,
        out_shape=jax.ShapeDtypeStruct((Bp, OUT), out_dtype),
        grid_spec=pltpu.PrefetchScalarGridSpec(
            num_scalar_prefetch=0,
            grid=grid,
            in_specs=[
                pl.BlockSpec((TM, IN), lambda i, k: (i, 0)),   # x: new tile per batch step
                pl.BlockSpec((IN, TH), lambda i, k: (0, k)),   # W1 (resident when k collapses)
                pl.BlockSpec((1, TH), lambda i, k: (0, k)),    # b1
                pl.BlockSpec((TH, OUT), lambda i, k: (k, 0)),  # W2 (resident when k collapses)
                pl.BlockSpec((1, OUT), lambda i, k: (0, 0)),   # b2
            ],
            out_specs=pl.BlockSpec((TM, OUT), lambda i, k: (i, 0)),
            scratch_shapes=[pltpu.VMEM((TM, OUT), jnp.float32)],
        ),
        compiler_params=pltpu.CompilerParams(
            dimension_semantics=("parallel", "arbitrary"),
            vmem_limit_bytes=vmem_limit,
        ),
        cost_estimate=cost,
    )(xp, w1p, b1p, w2p, b2p)

    return out_padded[:B, :out_size]


def mlp_forward(x, w1, b1, w2, b2, *, compute_dtype=jnp.bfloat16, tm=512, th=2048):
    """Convenience wrapper: pads/casts per call. Prefer prepare_mlp_params() +
    mlp_forward_prepared() in hot loops so the weight pad+cast is cached."""
    params, dims = prepare_mlp_params(w1, b1, w2, b2, compute_dtype)
    return mlp_forward_prepared(x, *params, dims=dims, tm=tm, th=th)


if __name__ == "__main__":
    # Small shapes consistent with the module's forward: x:(batch, input_size).
    # NOTE: at this toy size a standalone Pallas call is overhead-dominated; the
    # tiling logic above is aimed at production shapes (large batch / wide layers).
    batch, input_size, hidden_size, output_size = 8, 32, 64, 16

    key = jax.random.PRNGKey(0)
    kx, k1, kb1, k2, kb2 = jax.random.split(key, 5)

    # Deterministic synthetic parameters (PyTorch-like uniform fan-in init),
    # biases stored PyTorch-style as 1-D vectors.
    x = jax.random.normal(kx, (batch, input_size), dtype=jnp.float32)
    bound1 = 1.0 / (input_size ** 0.5)
    w1 = jax.random.uniform(k1, (input_size, hidden_size), jnp.float32, -bound1, bound1)
    b1 = jax.random.uniform(kb1, (hidden_size,), jnp.float32, -bound1, bound1)
    bound2 = 1.0 / (hidden_size ** 0.5)
    w2 = jax.random.uniform(k2, (hidden_size, output_size), jnp.float32, -bound2, bound2)
    b2 = jax.random.uniform(kb2, (output_size,), jnp.float32, -bound2, bound2)

    ref = (x @ w1 + b1[None, :]) @ w2 + b2[None, :]

    # Default bf16 fast path, weight pad+cast hoisted and cached (inference pattern).
    params, dims = prepare_mlp_params(w1, b1, w2, b2, jnp.bfloat16)
    out = mlp_forward_prepared(x, *params, dims=dims)
    out = jax.block_until_ready(out)
    assert out.shape == (batch, output_size)
    assert jnp.allclose(out, ref, atol=5e-2, rtol=5e-2), "bf16 mismatch vs reference"

    # Exact f32 compute path via the convenience wrapper.
    out_f32 = mlp_forward(x, w1, b1, w2, b2, compute_dtype=jnp.float32)
    out_f32 = jax.block_until_ready(out_f32)
    assert out_f32.shape == (batch, output_size)
    assert jnp.allclose(out_f32, ref, atol=1e-4, rtol=1e-4), "f32 mismatch vs reference"

    print("KERNEL_OK")
</pallas_src>

<mosaic_0001>
module attributes {stable_mosaic.version = 11 : i64} {
  func.func @mlp_kernel(%arg0: i32, %arg1: i32, %arg2: memref<16x128xbf16, #tpu.memory_space<vmem>>, %arg3: memref<128x128xbf16, #tpu.memory_space<vmem>>, %arg4: memref<1x128xf32, #tpu.memory_space<vmem>>, %arg5: memref<128x128xbf16, #tpu.memory_space<vmem>>, %arg6: memref<1x128xf32, #tpu.memory_space<vmem>>, %arg7: memref<16x128xf32, #tpu.memory_space<vmem>>, %arg8: memref<16x128xf32, #tpu.memory_space<vmem>>) attributes {dimension_semantics = [#tpu.dimension_semantics<parallel>, #tpu.dimension_semantics<arbitrary>], iteration_bounds = array<i64: 1, 1>, scalar_prefetch = 0 : i64, scratch_operands = 1 : i64, tpu.core_type = #tpu.core_type<tc>, window_params = [{transform_indices = @transform_0, window_bounds = array<i64: 16, 128>}, {transform_indices = @transform_1, window_bounds = array<i64: 128, 128>}, {transform_indices = @transform_2, window_bounds = array<i64: 1, 128>}, {transform_indices = @transform_3, window_bounds = array<i64: 128, 128>}, {pipeline_mode = #tpu.pipeline_mode<synchronous>, transform_indices = @transform_4, window_bounds = array<i64: 1, 128>}, {transform_indices = @transform_5, window_bounds = array<i64: 16, 128>}]} {
    %c0_i32 = arith.constant 0 : i32
    %0 = arith.cmpi eq, %arg1, %c0_i32 : i32
    %1 = arith.extui %0 : i1 to i32
    %c0_i32_0 = arith.constant 0 : i32
    %2 = arith.cmpi ne, %1, %c0_i32_0 : i32
    scf.if %2 {
      %cst_15 = arith.constant 0.000000e+00 : f32
      %18 = vector.broadcast %cst_15 : f32 to vector<16x128xf32>
      %c0_16 = arith.constant 0 : index
      %c0_17 = arith.constant 0 : index
      %19 = vector.load %arg8[%c0_16, %c0_17] : memref<16x128xf32, #tpu.memory_space<vmem>>, vector<16x128xf32>
      tpu.vector_store %arg8[%c0_16, %c0_17], %18 {strides = array<i32>} : memref<16x128xf32, #tpu.memory_space<vmem>>, vector<16x128xf32>,
    } else {
    }
    %c0 = arith.constant 0 : index
    %c0_1 = arith.constant 0 : index
    %3 = vector.load %arg2[%c0, %c0_1] : memref<16x128xbf16, #tpu.memory_space<vmem>>, vector<16x128xbf16>
    %c0_2 = arith.constant 0 : index
    %c0_3 = arith.constant 0 : index
    %4 = vector.load %arg3[%c0_2, %c0_3] : memref<128x128xbf16, #tpu.memory_space<vmem>>, vector<128x128xbf16>
    %cst = arith.constant dense<0.000000e+00> : vector<16x128xf32>
    %5 = tpu.matmul %3, %4, %cst {dimension_numbers = #tpu.dot_dimension_numbers<[1], [0], [0], [1], [0, 0, 1, 1], [], []>} : vector<16x128xbf16>, vector<128x128xbf16>, vector<16x128xf32> -> vector<16x128xf32>
    %c0_4 = arith.constant 0 : index
    %c0_5 = arith.constant 0 : index
    %6 = vector.load %arg4[%c0_4, %c0_5] : memref<1x128xf32, #tpu.memory_space<vmem>>, vector<1x128xf32>
    %7 = vector.broadcast %6 : vector<1x128xf32> to vector<16x128xf32>
    %8 = arith.addf %5, %7 : vector<16x128xf32>
    %9 = arith.truncf %8 : vector<16x128xf32> to vector<16x128xbf16>
    %c0_6 = arith.constant 0 : index
    %c0_7 = arith.constant 0 : index
    %10 = vector.load %arg8[%c0_6, %c0_7] : memref<16x128xf32, #tpu.memory_space<vmem>>, vector<16x128xf32>
    %c0_8 = arith.constant 0 : index
    %c0_9 = arith.constant 0 : index
    %11 = vector.load %arg5[%c0_8, %c0_9] : memref<128x128xbf16, #tpu.memory_space<vmem>>, vector<128x128xbf16>
    %cst_10 = arith.constant dense<0.000000e+00> : vector<16x128xf32>
    %12 = tpu.matmul %9, %11, %cst_10 {dimension_numbers = #tpu.dot_dimension_numbers<[1], [0], [0], [1], [0, 0, 1, 1], [], []>} : vector<16x128xbf16>, vector<128x128xbf16>, vector<16x128xf32> -> vector<16x128xf32>
    %13 = arith.addf %10, %12 : vector<16x128xf32>
    %c0_11 = arith.constant 0 : index
    %c0_12 = arith.constant 0 : index
    %14 = vector.load %arg8[%c0_11, %c0_12] : memref<16x128xf32, #tpu.memory_space<vmem>>, vector<16x128xf32>
    tpu.vector_store %arg8[%c0_11, %c0_12], %13 {strides = array<i32>} : memref<16x128xf32, #tpu.memory_space<vmem>>, vector<16x128xf32>,
    %c0_i32_13 = arith.constant 0 : i32
    %15 = arith.cmpi eq, %arg1, %c0_i32_13 : i32
    %16 = arith.extui %15 : i1 to i32
    %c0_i32_14 = arith.constant 0 : i32
    %17 = arith.cmpi ne, %16, %c0_i32_14 : i32
    scf.if %17 {
      %c0_15 = arith.constant 0 : index
      %c0_16 = arith.constant 0 : index
      %18 = vector.load %arg8[%c0_15, %c0_16] : memref<16x128xf32, #tpu.memory_space<vmem>>, vector<16x128xf32>
      %c0_17 = arith.constant 0 : index
      %c0_18 = arith.constant 0 : index
      %19 = vector.load %arg6[%c0_17, %c0_18] : memref<1x128xf32, #tpu.memory_space<vmem>>, vector<1x128xf32>
      %20 = vector.broadcast %19 : vector<1x128xf32> to vector<16x128xf32>
      %21 = arith.addf %18, %20 : vector<16x128xf32>
      %c0_19 = arith.constant 0 : index
      %c0_20 = arith.constant 0 : index
      %22 = vector.load %arg7[%c0_19, %c0_20] : memref<16x128xf32, #tpu.memory_space<vmem>>, vector<16x128xf32>
      tpu.vector_store %arg7[%c0_19, %c0_20], %21 {strides = array<i32>} : memref<16x128xf32, #tpu.memory_space<vmem>>, vector<16x128xf32>,
    } else {
    }
    return
  }
  func.func @transform_0(%arg0: i32, %arg1: i32) -> (i32, i32) {
    %c0_i32 = arith.constant 0 : i32
    %c0_i32_0 = arith.constant 0 : i32
    return %arg0, %c0_i32 : i32, i32
  }
  func.func @transform_1(%arg0: i32, %arg1: i32) -> (i32, i32) {
    %c0_i32 = arith.constant 0 : i32
    %c0_i32_0 = arith.constant 0 : i32
    return %c0_i32, %arg1 : i32, i32
  }
  func.func @transform_2(%arg0: i32, %arg1: i32) -> (i32, i32) {
    %c0_i32 = arith.constant 0 : i32
    %c0_i32_0 = arith.constant 0 : i32
    return %c0_i32, %arg1 : i32, i32
  }
  func.func @transform_3(%arg0: i32, %arg1: i32) -> (i32, i32) {
    %c0_i32 = arith.constant 0 : i32
    %c0_i32_0 = arith.constant 0 : i32
    return %arg1, %c0_i32 : i32, i32
  }
  func.func @transform_4(%arg0: i32, %arg1: i32) -> (i32, i32) {
    %c0_i32 = arith.constant 0 : i32
    %c0_i32_0 = arith.constant 0 : i32
    %c0_i32_1 = arith.constant 0 : i32
    return %c0_i32, %c0_i32_0 : i32, i32
  }
  func.func @transform_5(%arg0: i32, %arg1: i32) -> (i32, i32) {
    %c0_i32 = arith.constant 0 : i32
    %c0_i32_0 = arith.constant 0 : i32
    return %arg0, %c0_i32 : i32, i32
  }
}

</mosaic_0001>

<llo_original>
// kernel: mlp_forward_prepared.1
$region0: #{mlp_forward_prepared.1}
  #allocation0 [shape = 'u32[]', space=smem, size = 0x4, offset = 0x4, fixed_abs, tag = 'smem constant byte address 0x4 - core index']
  #allocation1 [shape = 'u32[72,128]{1,0:T(1,128)}', space=vmem, size = 0x9000, scoped, tag = 'internal scratch']
  #allocation2 [shape = 'f32[16,128]{1,0:T(8,128)}', space=vmem, size = 0x2000, scoped, tag = 'scratch operand']
  %s0 = inlined_call_operand.vmem [shape: bf16[16,128], index: 0, kind: input, shape index: {}]
  %s1 = inlined_call_operand.hbm [shape: bf16[128,128], index: 1, kind: input, shape index: {}]
  %s2 = inlined_call_operand.vmem [shape: f32[1,128], index: 2, kind: input, shape index: {}]
  %s3 = inlined_call_operand.hbm [shape: bf16[128,128], index: 3, kind: input, shape index: {}]
  %s4 = inlined_call_operand.vmem [shape: f32[1,128], index: 4, kind: input, shape index: {}]
  %s5 = inlined_call_operand.vmem [shape: f32[16,128], index: 5, kind: output, shape index: {}]
  %s6 = sld [smem:[#allocation0]]
  $region46: #{mlp_forward_prepared.1} parent=0
    _
  %s8 = ssub.s32 1, %s6
  %s9 = scalar_select 0, %s8, %s6
  $region1: #{mlp_forward_prepared.1} parent=0
    #allocation3 [shape = 'u8[32768]{0}', space=vmem, size = 0x8000, scoped, tag = 'input window, operand 1, single buffered']
    #allocation4 [shape = 's32[1]{0}', space=sflag, size = 0x4, scoped, tag = 'scoped memory for mlp_forward_prepared.1']
    #allocation5 [shape = 'u8[32768]{0}', space=vmem, size = 0x8000, scoped, tag = 'input window, operand 3, single buffered']
    #allocation6 [shape = 's32[1]{0}', space=sflag, size = 0x4, scoped, tag = 'scoped memory for mlp_forward_prepared.1']
    %10 = vsyncpa [#allocation4], 0
    %11 = vsyncpa [#allocation6], 0
    // Predicated region
    $region2: #{mlp_forward_prepared.1} parent=1 // pred_check
      _
    $region3: #{mlp_forward_prepared.1} parent=1 // pred_check_branch
      %13 = sbr.rel (0) target = $region5
    $region4: #{mlp_forward_prepared.1} parent=1 // pred_region
      _
    $region5: #{mlp_forward_prepared.1} parent=1 // pred_fallthru
      _
    // Predicated region
    $region6: #{mlp_forward_prepared.1} parent=1 // pred_check
      _
    $region7: #{mlp_forward_prepared.1} parent=1 // pred_check_branch
      %15 = sbr.rel (0) target = $region9
    $region8: #{mlp_forward_prepared.1} parent=1 // pred_region
      %17 = vsyncadd [#allocation4], 0
      %s18 = sshll.u32 %s1, 4
      %s19 = int_to_ptr.hbm [resolvable:$true] %s18
      %s20 = sshll.u32 [#allocation3], 4
      %s21 = int_to_ptr.vmem [resolvable:$true] %s20
      %26 = dma.hbm_to_vmem [thread:$0]  %s19, 1024, %s21, [#allocation4], 64, 64, 4
    $region9: #{mlp_forward_prepared.1} parent=1 // pred_fallthru
      _
    // Predicated region
    $region10: #{mlp_forward_prepared.1} parent=1 // pred_check
      _
    $region11: #{mlp_forward_prepared.1} parent=1 // pred_check_branch
      %28 = sbr.rel (0) target = $region13
    $region12: #{mlp_forward_prepared.1} parent=1 // pred_region
      _
    $region13: #{mlp_forward_prepared.1} parent=1 // pred_fallthru
      _
    // Predicated region
    $region14: #{mlp_forward_prepared.1} parent=1 // pred_check
      _
    $region15: #{mlp_forward_prepared.1} parent=1 // pred_check_branch
      %30 = sbr.rel (0) target = $region17
    $region16: #{mlp_forward_prepared.1} parent=1 // pred_region
      %32 = vsyncadd [#allocation6], 0
      %s33 = sshll.u32 %s3, 4
      %s34 = int_to_ptr.hbm [resolvable:$true] %s33
      %s35 = sshll.u32 [#allocation5], 4
      %s36 = int_to_ptr.vmem [resolvable:$true] %s35
      %41 = dma.hbm_to_vmem [thread:$0]  %s34, 1024, %s36, [#allocation6], 64, 64, 4
    $region17: #{mlp_forward_prepared.1} parent=1 // pred_fallthru
      _
    // Predicated region
    $region18: #{mlp_forward_prepared.1} parent=1 // pred_check
      _
    $region19: #{mlp_forward_prepared.1} parent=1 // pred_check_branch
      %43 = sbr.rel (0) target = $region21
    $region20: #{mlp_forward_prepared.1} parent=1 // pred_region
      _
    $region21: #{mlp_forward_prepared.1} parent=1 // pred_fallthru
      _
    // Predicated region
    $region22: #{mlp_forward_prepared.1} parent=1 // pred_check
      _
    $region23: #{mlp_forward_prepared.1} parent=1 // pred_check_branch
      %45 = sbr.rel (0) target = $region25
    $region24: #{mlp_forward_prepared.1} parent=1 // pred_region
      %47 = dma.done [#allocation4], 1024
    $region25: #{mlp_forward_prepared.1} parent=1 // pred_fallthru
      _
    // Predicated region
    $region26: #{mlp_forward_prepared.1} parent=1 // pred_check
      _
    $region27: #{mlp_forward_prepared.1} parent=1 // pred_check_branch
      %49 = sbr.rel (0) target = $region29
    $region28: #{mlp_forward_prepared.1} parent=1 // pred_region
      %51 = dma.done [#allocation6], 1024
    $region29: #{mlp_forward_prepared.1} parent=1 // pred_fallthru
      _
    %p52 = scmp.eq.s32.totalorder 0, 0
    // Predicated region
    $region30: #{mlp_forward_prepared.1} parent=1 // pred_check
      %p53 = pneg %p52
    $region31: #{mlp_forward_prepared.1} parent=1 // pred_check_branch
      %55 = sbr.rel (%p53) target = $region33
    $region32: #{mlp_forward_prepared.1} parent=1 // pred_region
      %56 = vst [vmem:[#allocation2] sm:$0xff] 0.0
      %57 = vst [vmem:[#allocation2 + $0x8] sm:$0xff] 0.0
    $region33: #{mlp_forward_prepared.1} parent=1 // pred_fallthru
      _
    %v58 = vld [vmem:[%s0] sm:$0xf]
    %v59 = vld [vmem:[%s0 + $0x4] sm:$0xf]
    %v60 = vld [vmem:[#allocation3] sm:$0xf]
    %v61 = vld [vmem:[#allocation3 + $0x4] sm:$0xf]
    %v62 = vld [vmem:[#allocation3 + $0x8] sm:$0xf]
    %v63 = vld [vmem:[#allocation3 + $0xc] sm:$0xf]
    %v64 = vld [vmem:[#allocation3 + $0x10] sm:$0xf]
    %v65 = vld [vmem:[#allocation3 + $0x14] sm:$0xf]
    %v66 = vld [vmem:[#allocation3 + $0x18] sm:$0xf]
    %v67 = vld [vmem:[#allocation3 + $0x1c] sm:$0xf]
    %v68 = vld [vmem:[#allocation3 + $0x20] sm:$0xf]
    %v69 = vld [vmem:[#allocation3 + $0x24] sm:$0xf]
    %v70 = vld [vmem:[#allocation3 + $0x28] sm:$0xf]
    %v71 = vld [vmem:[#allocation3 + $0x2c] sm:$0xf]
    %v72 = vld [vmem:[#allocation3 + $0x30] sm:$0xf]
    %v73 = vld [vmem:[#allocation3 + $0x34] sm:$0xf]
    %v74 = vld [vmem:[#allocation3 + $0x38] sm:$0xf]
    %v75 = vld [vmem:[#allocation3 + $0x3c] sm:$0xf]
    %v76 = vld [vmem:[%s2] sm:$0x1]
    %v78 = vperm.slane %v76, 0
    %v82 = vunpack.c.l.b16 %v58
    %v83 = vunpack.c.l.b16 %v59
    %v84 = vpack.c.b16 %v83, %v82
    %v102 = vunpack.c.l.b16 %v60
    %v103 = vunpack.c.l.b16 %v61
    %v104 = vunpack.c.l.b16 %v62
    %v105 = vunpack.c.l.b16 %v63
    %v106 = vunpack.c.l.b16 %v64
    %v107 = vunpack.c.l.b16 %v65
    %v108 = vunpack.c.l.b16 %v66
    %v109 = vunpack.c.l.b16 %v67
    %v110 = vunpack.c.l.b16 %v68
    %v111 = vunpack.c.l.b16 %v69
    %v112 = vunpack.c.l.b16 %v70
    %v113 = vunpack.c.l.b16 %v71
    %v114 = vunpack.c.l.b16 %v72
    %v115 = vunpack.c.l.b16 %v73
    %v116 = vunpack.c.l.b16 %v74
    %v117 = vunpack.c.l.b16 %v75
    %v118 = vpack.c.b16 %v103, %v102
    %v119 = vpack.c.b16 %v105, %v104
    %v120 = vpack.c.b16 %v107, %v106
    %v121 = vpack.c.b16 %v109, %v108
    %v122 = vpack.c.b16 %v111, %v110
    %v123 = vpack.c.b16 %v113, %v112
    %v124 = vpack.c.b16 %v115, %v114
    %v125 = vpack.c.b16 %v117, %v116
    %134 = vmatpush.bf16.msra.mxu0 %v125
    %135 = vmatpush.bf16.msra.mxu0 %v124
    %136 = vmatpush.bf16.msra.mxu0 %v123
    %137 = vmatpush.bf16.msra.mxu0 %v122
    %138 = vmatpush.bf16.msra.mxu0 %v121
    %139 = vmatpush.bf16.msra.mxu0 %v120
    %140 = vmatpush.bf16.msra.mxu0 %v119
    %141 = vmatpush.bf16.msra.mxu0 %v118
    %142 = vmatmul.bf16.gmra.mxu0 %v84
    %v143 = vpop.f32.mrf.mxu0
    %v144 = vadd.f32 %v78, %v143
    %v145 = vpop.f32.mrf.mxu0
    %v146 = vadd.f32 %v78, %v145
    %147 = vdwg.mxu0
    %v148 = vpack.c.bf16 %v146, %v144
    %v149 = vld [vmem:[#allocation2] sm:$0xff]
    %v150 = vld [vmem:[#allocation2 + $0x8] sm:$0xff]
    %v151 = vld [vmem:[#allocation5] sm:$0xf]
    %v152 = vld [vmem:[#allocation5 + $0x4] sm:$0xf]
    %v153 = vld [vmem:[#allocation5 + $0x8] sm:$0xf]
    %v154 = vld [vmem:[#allocation5 + $0xc] sm:$0xf]
    %v155 = vld [vmem:[#allocation5 + $0x10] sm:$0xf]
    %v156 = vld [vmem:[#allocation5 + $0x14] sm:$0xf]
    %v157 = vld [vmem:[#allocation5 + $0x18] sm:$0xf]
    %v158 = vld [vmem:[#allocation5 + $0x1c] sm:$0xf]
    %v159 = vld [vmem:[#allocation5 + $0x20] sm:$0xf]
    %v160 = vld [vmem:[#allocation5 + $0x24] sm:$0xf]
    %v161 = vld [vmem:[#allocation5 + $0x28] sm:$0xf]
    %v162 = vld [vmem:[#allocation5 + $0x2c] sm:$0xf]
    %v163 = vld [vmem:[#allocation5 + $0x30] sm:$0xf]
    %v164 = vld [vmem:[#allocation5 + $0x34] sm:$0xf]
    %v165 = vld [vmem:[#allocation5 + $0x38] sm:$0xf]
    %v166 = vld [vmem:[#allocation5 + $0x3c] sm:$0xf]
    %v183 = vunpack.c.l.b16 %v151
    %v184 = vunpack.c.l.b16 %v152
    %v185 = vunpack.c.l.b16 %v153
    %v186 = vunpack.c.l.b16 %v154
    %v187 = vunpack.c.l.b16 %v155
    %v188 = vunpack.c.l.b16 %v156
    %v189 = vunpack.c.l.b16 %v157
    %v190 = vunpack.c.l.b16 %v158
    %v191 = vunpack.c.l.b16 %v159
    %v192 = vunpack.c.l.b16 %v160
    %v193 = vunpack.c.l.b16 %v161
    %v194 = vunpack.c.l.b16 %v162
    %v195 = vunpack.c.l.b16 %v163
    %v196 = vunpack.c.l.b16 %v164
    %v197 = vunpack.c.l.b16 %v165
    %v198 = vunpack.c.l.b16 %v166
    %v199 = vpack.c.b16 %v184, %v183
    %v200 = vpack.c.b16 %v186, %v185
    %v201 = vpack.c.b16 %v188, %v187
    %v202 = vpack.c.b16 %v190, %v189
    %v203 = vpack.c.b16 %v192, %v191
    %v204 = vpack.c.b16 %v194, %v193
    %v205 = vpack.c.b16 %v196, %v195
    %v206 = vpack.c.b16 %v198, %v197
    %215 = vmatpush.bf16.msra.mxu0 %v206
    %216 = vmatpush.bf16.msra.mxu0 %v205
    %217 = vmatpush.bf16.msra.mxu0 %v204
    %218 = vmatpush.bf16.msra.mxu0 %v203
    %219 = vmatpush.bf16.msra.mxu0 %v202
    %220 = vmatpush.bf16.msra.mxu0 %v201
    %221 = vmatpush.bf16.msra.mxu0 %v200
    %222 = vmatpush.bf16.msra.mxu0 %v199
    %223 = vmatmul.bf16.gmra.mxu0 %v148
    %v224 = vpop.f32.mrf.mxu0
    %v225 = vadd.f32 0.0, %v224
    %v226 = vpop.f32.mrf.mxu0
    %v227 = vadd.f32 0.0, %v226
    %228 = vdwg.mxu0
    %v229 = vadd.f32 %v149, %v225
    %v230 = vadd.f32 %v150, %v227
    %231 = vst [vmem:[#allocation2] sm:$0xff] %v229
    %232 = vst [vmem:[#allocation2 + $0x8] sm:$0xff] %v230
    // Predicated region
    $region34: #{mlp_forward_prepared.1} parent=1 // pred_check
      %p233 = pneg %p52
    $region35: #{mlp_forward_prepared.1} parent=1 // pred_check_branch
      %235 = sbr.rel (%p233) target = $region37
    $region36: #{mlp_forward_prepared.1} parent=1 // pred_region
      %v236 = vld [vmem:[#allocation2] sm:$0xff]
      %v237 = vld [vmem:[#allocation2 + $0x8] sm:$0xff]
      %v238 = vld [vmem:[%s4] sm:$0x1]
      %v240 = vperm.slane %v238, 0
      %v242 = vadd.f32 %v236, %v240
      %v243 = vadd.f32 %v237, %v240
      %244 = vst [vmem:[%s5] sm:$0xff] %v242
      %245 = vst [vmem:[%s5 + $0x8] sm:$0xff] %v243
    $region37: #{mlp_forward_prepared.1} parent=1 // pred_fallthru
      _
    // Predicated region
    $region38: #{mlp_forward_prepared.1} parent=1 // pred_check
      _
    $region39: #{mlp_forward_prepared.1} parent=1 // pred_check_branch
      %247 = sbr.rel (0) target = $region41
    $region40: #{mlp_forward_prepared.1} parent=1 // pred_region
      _
    $region41: #{mlp_forward_prepared.1} parent=1 // pred_fallthru
      _
    // Predicated region
    $region42: #{mlp_forward_prepared.1} parent=1 // pred_check
      _
    $region43: #{mlp_forward_prepared.1} parent=1 // pred_check_branch
      %249 = sbr.rel (0) target = $region45
    $region44: #{mlp_forward_prepared.1} parent=1 // pred_region
      _
    $region45: #{mlp_forward_prepared.1} parent=1 // pred_fallthru
      _
    %250 = vsyncpa [#allocation4], 1
    %251 = vsyncpa [#allocation6], 1

</llo_original>
